<compile_context>
chip_gen: v7x
topology: tpu7x:2x2x1
jax: 0.10.0
libtpu: 0.0.40
codegen_flags: <defaults>
</compile_context>

<pallas_src>
import functools

import jax
import jax.numpy as jnp
from jax.experimental import pallas as pl
from jax.experimental.pallas import tpu as pltpu


# ---------------------------------------------------------------------------
# helpers
# ---------------------------------------------------------------------------
def _round_up(x, m):
    return (x + m - 1) // m * m


@functools.lru_cache(maxsize=None)
def _vmem_limit():
    # Generation-aware scoped-VMEM budget: leave headroom on 64-MiB parts (v7x),
    # use most of the 128-MiB parts (v5e/v6e).
    try:
        cap = pltpu.get_tpu_info().vmem_capacity_bytes
    except Exception:
        cap = 128 * 1024 * 1024
    return 96 * 1024 * 1024 if cap >= 100 * 1024 * 1024 else 40 * 1024 * 1024


def _pick_tile_m(m):
    """Row-tile choice: biggest tile whose zero-pad waste stays small."""
    for c in (512, 256, 128, 64, 32, 16):
        p = _round_up(m, c)
        if p - m <= max(m // 8, 16):
            return c, p
    p = _round_up(m, 16)
    return p, p


def _pad_tail(a, rows, cols, dtype):
    a = a.astype(dtype)
    if a.shape == (rows, cols):
        return a
    return jnp.pad(a, ((0, rows - a.shape[0]), (0, cols - a.shape[1])))


def _erf(x):
    # Abramowitz & Stegun 7.1.26 rational approximation of erf (|err|<1.5e-7),
    # so exact (erf-based) torch.nn.GELU lowers on Mosaic with exp only.
    p = 0.3275911
    a1, a2, a3, a4, a5 = (0.254829592, -0.284496736, 1.421413741,
                          -1.453152027, 1.061405429)
    sign = jnp.where(x < 0.0, -1.0, 1.0)
    ax = jnp.abs(x)
    t = 1.0 / (1.0 + p * ax)
    poly = ((((a5 * t + a4) * t + a3) * t + a2) * t + a1) * t
    return sign * (1.0 - poly * jnp.exp(-ax * ax))


def _gelu_exact(x):
    # torch.nn.GELU() default (approximate='none'): 0.5*x*(1 + erf(x/sqrt(2)))
    return 0.5 * x * (1.0 + _erf(x * 0.7071067811865476))


# ---------------------------------------------------------------------------
# Tiled matmul with fused epilogues (1x1 convs, Linears, stride==k convs)
# ---------------------------------------------------------------------------
def _matmul_kernel(*refs, epilogue):
    x_ref, w_ref, b_ref = refs[:3]
    o_ref, acc_ref = refs[-2], refs[-1]
    extras = refs[3:-2]
    k = pl.program_id(2)

    @pl.when(k == 0)
    def _():
        acc_ref[...] = jnp.zeros_like(acc_ref)

    acc_ref[...] += jnp.dot(x_ref[...], w_ref[...],
                            preferred_element_type=jnp.float32)

    @pl.when(k == pl.num_programs(2) - 1)
    def _():
        y = acc_ref[...] + b_ref[...]
        if epilogue == "gelu":
            y = _gelu_exact(y)
        elif epilogue == "scale_residual":
            g_ref, r_ref = extras
            y = r_ref[...].astype(jnp.float32) + g_ref[...] * y
        elif epilogue == "sigmoid_gate":
            (g_ref,) = extras
            y = jax.nn.sigmoid(y) * g_ref[...].astype(jnp.float32)
        o_ref[...] = y.astype(o_ref.dtype)


@functools.partial(jax.jit, static_argnames=("n_out", "epilogue", "out_dtype"))
def matmul_fused(x, w, b, n_out, epilogue="none", gamma=None, res=None,
                 gate=None, out_dtype=jnp.float32):
    """(M,K)@(K,Np)+b with fused epilogue.  `w`/`b`/`gamma` are pre-padded to a
    lane-dense Np at init (no per-forward weight pads); MXU inputs are bf16
    with an f32 VMEM accumulator.  Note: bf16 MXU inputs deviate slightly from
    PyTorch's f32 convs (~1e-2 rel drift through deep stacks)."""
    M, K = x.shape
    Kw, Np = w.shape
    assert K == Kw and Np % 128 == 0
    tm, Mp = _pick_tile_m(M)
    tn = 256 if Np % 256 == 0 else 128
    tk = K
    for c in (1024, 512, 256, 128):
        if K % c == 0:
            tk = c
            break

    args = [_pad_tail(x, Mp, K, jnp.bfloat16), w, b]
    specs = [pl.BlockSpec((tm, tk), lambda i, j, k: (i, k)),
             pl.BlockSpec((tk, tn), lambda i, j, k: (k, j)),
             pl.BlockSpec((1, tn), lambda i, j, k: (0, j))]
    if epilogue == "scale_residual":
        args += [gamma, _pad_tail(res, Mp, Np, jnp.bfloat16)]
        specs += [pl.BlockSpec((1, tn), lambda i, j, k: (0, j)),
                  pl.BlockSpec((tm, tn), lambda i, j, k: (i, j))]
    elif epilogue == "sigmoid_gate":
        args += [_pad_tail(gate, Mp, Np, jnp.bfloat16)]
        specs += [pl.BlockSpec((tm, tn), lambda i, j, k: (i, j))]

    out = pl.pallas_call(
        functools.partial(_matmul_kernel, epilogue=epilogue),
        grid=(Mp // tm, Np // tn, K // tk),
        in_specs=specs,
        out_specs=pl.BlockSpec((tm, tn), lambda i, j, k: (i, j)),
        out_shape=jax.ShapeDtypeStruct((Mp, Np), out_dtype),
        scratch_shapes=[pltpu.VMEM((tm, tn), jnp.float32)],
        compiler_params=pltpu.CompilerParams(
            dimension_semantics=("parallel", "parallel", "arbitrary"),
            vmem_limit_bytes=_vmem_limit()),
    )(*args)
    return out[:M, :n_out]


# ---------------------------------------------------------------------------
# Tap-accumulated stride-1 conv (3x3 / 5x5 / dilated) — no im2col inflation
# ---------------------------------------------------------------------------
def _tapconv_kernel(off_ref, x_ref, w_ref, b_ref, o_ref, acc_ref, *, n_rows):
    t = pl.program_id(2)

    @pl.when(t == 0)
    def _():
        acc_ref[...] = jnp.zeros_like(acc_ref)

    off = off_ref[t]                                     # per-tap flat row offset
    lhs = x_ref[0, pl.ds(off, n_rows), :]                # shifted window (bf16)
    acc_ref[...] += jnp.dot(lhs, w_ref[0], preferred_element_type=jnp.float32)

    @pl.when(t == pl.num_programs(2) - 1)
    def _():
        o_ref[0] = (acc_ref[...] + b_ref[...]).astype(o_ref.dtype)


@functools.partial(jax.jit, static_argnames=("taps", "pad", "n_out", "out_dtype"))
def conv_taps_nhwc(x, w_taps, b, *, taps, pad, n_out, out_dtype=jnp.bfloat16):
    """Stride-1 conv as a sum over taps.  The zero-padded image is flattened to
    (N, Hp*Wp, Cin) and stays VMEM-resident per batch element (same block index
    across the cout/tap grid axes); each tap reads a dynamically shifted row
    window straight into the MXU.  Output is produced on a wide (OH, Wp) row
    grid; the junk columns are sliced off in XLA glue (a ~1x copy instead of
    the 9x/25x im2col blow-up)."""
    N, H, W, Cin = x.shape
    T = len(taps)
    Hp, Wp = H + 2 * pad, W + 2 * pad
    OH, OW = H, W
    n_rows = OH * Wp
    max_dx = max(dx for _, dx in taps)
    Lp = Hp * Wp + max_dx
    Np = w_taps.shape[-1]
    tn = 256 if Np % 256 == 0 else 128

    xp = jnp.pad(x.astype(jnp.bfloat16),
                 ((0, 0), (pad, pad), (pad, pad), (0, 0)))
    xf = jnp.pad(xp.reshape(N, Hp * Wp, Cin),
                 ((0, 0), (0, Lp - Hp * Wp), (0, 0)))
    offs = jnp.asarray([dy * Wp + dx for dy, dx in taps], jnp.int32)

    out = pl.pallas_call(
        functools.partial(_tapconv_kernel, n_rows=n_rows),
        grid_spec=pltpu.PrefetchScalarGridSpec(
            num_scalar_prefetch=1,
            grid=(N, Np // tn, T),
            in_specs=[
                pl.BlockSpec((1, Lp, Cin), lambda n, cb, t, sp: (n, 0, 0)),
                pl.BlockSpec((1, Cin, tn), lambda n, cb, t, sp: (t, 0, cb)),
                pl.BlockSpec((1, tn), lambda n, cb, t, sp: (0, cb)),
            ],
            out_specs=pl.BlockSpec((1, n_rows, tn),
                                   lambda n, cb, t, sp: (n, 0, cb)),
            scratch_shapes=[pltpu.VMEM((n_rows, tn), jnp.float32)]),
        out_shape=jax.ShapeDtypeStruct((N, n_rows, Np), out_dtype),
        compiler_params=pltpu.CompilerParams(
            dimension_semantics=("parallel", "parallel", "arbitrary"),
            vmem_limit_bytes=_vmem_limit()),
    )(offs, xf, w_taps, b)
    return out.reshape(N, OH, Wp, Np)[:, :, :OW, :n_out]


def _taps_square(k, dil, pad):
    c = (k - 1) // 2
    return tuple((pad + (i - c) * dil, pad + (j - c) * dil)
                 for i in range(k) for j in range(k))


# ---------------------------------------------------------------------------
# LayerNorm over the channel (last) dim, tiled over rows
# ---------------------------------------------------------------------------
def _layernorm_kernel(x_ref, w_ref, b_ref, o_ref, *, eps):
    x = x_ref[...].astype(jnp.float32)
    mean = jnp.mean(x, axis=-1, keepdims=True)
    xc = x - mean
    var = jnp.mean(xc * xc, axis=-1, keepdims=True)
    y = xc * jax.lax.rsqrt(var + eps) * w_ref[...] + b_ref[...]
    o_ref[...] = y.astype(o_ref.dtype)


@functools.partial(jax.jit, static_argnames=("eps", "out_dtype"))
def layernorm_2d(x2, w, b, eps=1e-6, out_dtype=jnp.bfloat16):
    M, C = x2.shape
    tm, Mp = _pick_tile_m(M)
    xp = x2 if Mp == M else jnp.pad(x2, ((0, Mp - M), (0, 0)))
    y = pl.pallas_call(
        functools.partial(_layernorm_kernel, eps=eps),
        grid=(Mp // tm,),
        in_specs=[pl.BlockSpec((tm, C), lambda i: (i, 0)),
                  pl.BlockSpec((1, C), lambda i: (0, 0)),
                  pl.BlockSpec((1, C), lambda i: (0, 0))],
        out_specs=pl.BlockSpec((tm, C), lambda i: (i, 0)),
        out_shape=jax.ShapeDtypeStruct((Mp, C), out_dtype),
        compiler_params=pltpu.CompilerParams(
            dimension_semantics=("parallel",),
            vmem_limit_bytes=_vmem_limit()),
    )(xp, w, b)
    return y[:M]


# ---------------------------------------------------------------------------
# Training-mode BatchNorm2d (+ exact GELU): 2-pass, row-tiled, bf16 activations
# ---------------------------------------------------------------------------
def _bn_stats_kernel(x_ref, s_ref, q_ref):
    @pl.when(pl.program_id(0) == 0)
    def _():
        s_ref[...] = jnp.zeros_like(s_ref)
        q_ref[...] = jnp.zeros_like(q_ref)

    x = x_ref[...].astype(jnp.float32)
    s_ref[...] += jnp.sum(x, axis=0, keepdims=True)
    q_ref[...] += jnp.sum(x * x, axis=0, keepdims=True)


def _bn_apply_kernel(x_ref, s_ref, q_ref, w_ref, b_ref, o_ref, *, count, eps):
    x = x_ref[...].astype(jnp.float32)
    mean = s_ref[...] * (1.0 / count)
    # TODO(synk): switch to a Welford/Chan tile combine if very large M shows
    # cancellation in E[x^2]-E[x]^2 (clamped at 0 here).
    var = jnp.maximum(q_ref[...] * (1.0 / count) - mean * mean, 0.0)
    y = (x - mean) * jax.lax.rsqrt(var + eps) * w_ref[...] + b_ref[...]
    o_ref[...] = _gelu_exact(y).astype(o_ref.dtype)


@functools.partial(jax.jit, static_argnames=("eps", "out_dtype"))
def batchnorm_gelu_nhwc(x, w, b, eps=1e-5, out_dtype=jnp.bfloat16):
    """Per-channel batch stats (biased variance) + exact GELU."""
    N, H, W, C = x.shape
    M = N * H * W
    tm, Mp = _pick_tile_m(M)
    x2 = x.reshape(M, C)
    xp = x2 if Mp == M else jnp.pad(x2, ((0, Mp - M), (0, 0)))
    grid = (Mp // tm,)
    row_spec = pl.BlockSpec((tm, C), lambda i: (i, 0))
    vec_spec = pl.BlockSpec((1, C), lambda i: (0, 0))

    s, q = pl.pallas_call(
        _bn_stats_kernel,
        grid=grid,
        in_specs=[row_spec],
        out_specs=(vec_spec, vec_spec),
        out_shape=(jax.ShapeDtypeStruct((1, C), jnp.float32),
                   jax.ShapeDtypeStruct((1, C), jnp.float32)),
        compiler_params=pltpu.CompilerParams(
            dimension_semantics=("arbitrary",),
            vmem_limit_bytes=_vmem_limit()),
    )(xp)

    y = pl.pallas_call(
        functools.partial(_bn_apply_kernel, count=float(M), eps=eps),
        grid=grid,
        in_specs=[row_spec, vec_spec, vec_spec, vec_spec, vec_spec],
        out_specs=row_spec,
        out_shape=jax.ShapeDtypeStruct((Mp, C), out_dtype),
        compiler_params=pltpu.CompilerParams(
            dimension_semantics=("parallel",),
            vmem_limit_bytes=_vmem_limit()),
    )(xp, s, q, w, b)
    return y[:M].reshape(N, H, W, C)


# ---------------------------------------------------------------------------
# Depthwise 7x7 conv fused with the following LayerNorm (ConvNeXt Block head)
# ---------------------------------------------------------------------------
def _dwconv_ln_kernel(x_ref, w_ref, b_ref, lnw_ref, lnb_ref, o_ref,
                      *, H, W, th, eps):
    C = w_ref.shape[-1]
    b = b_ref[...].reshape(1, 1, C)
    lnw = lnw_ref[...].reshape(1, 1, C)
    lnb = lnb_ref[...].reshape(1, 1, C)
    for r0 in range(0, H, th):
        rows = min(th, H - r0)
        # Small row tile (6-row halo); per-tap accumulator stays in a (rows,W,C)
        # f32 tile instead of a whole-image VMEM read-modify-write.
        xt = x_ref[0, r0:r0 + rows + 6, :, :]            # bf16 (rows+6, W+6, C)
        acc = jnp.zeros((rows, W, C), jnp.float32)
        for j in range(7):
            xj = xt[:, j:j + W, :]
            for i in range(7):
                wt = w_ref[i * 7 + j:i * 7 + j + 1, :].reshape(1, 1, C)
                acc = acc + xj[i:i + rows] * wt          # bf16*f32 -> f32
        y = acc + b
        mean = jnp.mean(y, axis=-1, keepdims=True)
        yc = y - mean
        var = jnp.mean(yc * yc, axis=-1, keepdims=True)
        o = yc * jax.lax.rsqrt(var + eps) * lnw + lnb
        o_ref[0, r0:r0 + rows, :, :] = o.astype(o_ref.dtype)


@functools.partial(jax.jit, static_argnames=("eps", "out_dtype"))
def dwconv7x7_ln_nhwc(x, w_taps, b, ln_w, ln_b, eps=1e-6,
                      out_dtype=jnp.bfloat16):
    """Depthwise 7x7 (stride 1, pad 3) + bias + channels-last LayerNorm."""
    N, H, W, C = x.shape
    Hp, Wp = H + 6, W + 6
    th = min(8, H)
    xp = jnp.pad(x.astype(jnp.bfloat16), ((0, 0), (3, 3), (3, 3), (0, 0)))
    return pl.pallas_call(
        functools.partial(_dwconv_ln_kernel, H=H, W=W, th=th, eps=eps),
        grid=(N,),
        in_specs=[pl.BlockSpec((1, Hp, Wp, C), lambda n: (n, 0, 0, 0)),
                  pl.BlockSpec((49, C), lambda n: (0, 0)),
                  pl.BlockSpec((1, C), lambda n: (0, 0)),
                  pl.BlockSpec((1, C), lambda n: (0, 0)),
                  pl.BlockSpec((1, C), lambda n: (0, 0))],
        out_specs=pl.BlockSpec((1, H, W, C), lambda n: (n, 0, 0, 0)),
        out_shape=jax.ShapeDtypeStruct((N, H, W, C), out_dtype),
        compiler_params=pltpu.CompilerParams(
            dimension_semantics=("parallel",),
            vmem_limit_bytes=_vmem_limit()),
    )(xp, w_taps, b, ln_w, ln_b)


# ---------------------------------------------------------------------------
# 3x3 max pool, stride 1, pad 1 (grid over batch)
# ---------------------------------------------------------------------------
def _maxpool3_kernel(x_ref, o_ref, *, H, W):
    x = x_ref[...]
    out = None
    for j in range(3):
        xj = x[:, :, j:j + W, :]
        for i in range(3):
            v = xj[:, i:i + H]
            out = v if out is None else jnp.maximum(out, v)
    o_ref[...] = out.astype(o_ref.dtype)


@jax.jit
def maxpool3x3_nhwc(x):
    N, H, W, C = x.shape
    xp = jnp.pad(x.astype(jnp.bfloat16), ((0, 0), (1, 1), (1, 1), (0, 0)),
                 constant_values=-jnp.inf)
    return pl.pallas_call(
        functools.partial(_maxpool3_kernel, H=H, W=W),
        grid=(N,),
        in_specs=[pl.BlockSpec((1, H + 2, W + 2, C), lambda n: (n, 0, 0, 0))],
        out_specs=pl.BlockSpec((1, H, W, C), lambda n: (n, 0, 0, 0)),
        out_shape=jax.ShapeDtypeStruct((N, H, W, C), jnp.bfloat16),
        compiler_params=pltpu.CompilerParams(
            dimension_semantics=("parallel",),
            vmem_limit_bytes=_vmem_limit()),
    )(xp)


# ---------------------------------------------------------------------------
# 1x1 convs and stride==kernel convs -> plain tiled matmul (no inflation)
# ---------------------------------------------------------------------------
@functools.partial(jax.jit, static_argnames=("kh", "kw", "stride", "n_out",
                                              "epilogue", "out_dtype"))
def conv2d_mm_nhwc(x, w2d, b, *, kh, kw, stride, n_out, epilogue="none",
                   gate=None, out_dtype=jnp.bfloat16):
    N, H, W, Cin = x.shape
    if kh == 1 and kw == 1:
        OH, OW = H, W
        patches = x.reshape(N * H * W, Cin)
    else:
        assert stride == kh == kw, "overlapping convs use conv_taps_nhwc"
        OH, OW = H // kh, W // kw
        patches = (x.astype(jnp.bfloat16)
                   .reshape(N, OH, kh, OW, kw, Cin)
                   .transpose(0, 1, 3, 2, 4, 5)
                   .reshape(N * OH * OW, kh * kw * Cin))
    gate2 = None if gate is None else gate.reshape(N * OH * OW, n_out)
    y = matmul_fused(patches, w2d, b, n_out=n_out, epilogue=epilogue,
                     gate=gate2, out_dtype=out_dtype)
    return y.reshape(N, OH, OW, n_out)


# ---------------------------------------------------------------------------
# Module forwards (NHWC, bf16 activations)
# ---------------------------------------------------------------------------
def block_forward(x, p):
    """ConvNeXt Block: dwconv7x7(+LN fused) -> Linear+GELU -> Linear(+gamma,+res)."""
    N, H, W, C = x.shape
    res = x.reshape(N * H * W, C)
    y = dwconv7x7_ln_nhwc(x, p["dw_w"], p["dw_b"], p["ln_w"], p["ln_b"], eps=1e-6)
    h = matmul_fused(y.reshape(N * H * W, C), p["pw1"]["w"], p["pw1"]["b"],
                     n_out=p["pw1"]["n"], epilogue="gelu",
                     out_dtype=jnp.bfloat16)
    out = matmul_fused(h, p["pw2"]["w"], p["pw2"]["b"], n_out=p["pw2"]["n"],
                       epilogue="scale_residual", gamma=p["gamma"], res=res,
                       out_dtype=jnp.bfloat16)
    return out.reshape(N, H, W, C)


def dcblock_forward(x, p):
    # The three dilated 3x3 branches (d=1,3,5, Cout=32 each) are folded into one
    # 27-tap conv over a shared pad-5 canvas producing the concatenated 96
    # channels directly; per-channel BN stats over the concat equal per-branch
    # BN, so a single fused BN+GELU follows.
    taps = tuple(t for d in (1, 3, 5) for t in _taps_square(3, d, 5))
    y = conv_taps_nhwc(x, p["w"], p["b"], taps=taps, pad=5, n_out=p["n"])
    return batchnorm_gelu_nhwc(y, p["bn_w"], p["bn_b"], eps=1e-5)


def customblock_forward(x, p):
    y = conv_taps_nhwc(x, p["c3"]["w"], p["c3"]["b"],
                       taps=_taps_square(3, 1, 1), pad=1, n_out=p["c3"]["n"])
    y = batchnorm_gelu_nhwc(y, p["bn_w"], p["bn_b"], eps=1e-5)
    # 1x1 conv with fused sigmoid gating: out = sigmoid(conv1x1(y)) * y
    return conv2d_mm_nhwc(y, p["c1"]["w"], p["c1"]["b"], kh=1, kw=1, stride=1,
                          n_out=p["c1"]["n"], epilogue="sigmoid_gate", gate=y)


def paralleconv_forward(x, p):
    pa = conv2d_mm_nhwc(x, p["pa"]["w"], p["pa"]["b"], kh=1, kw=1, stride=1,
                        n_out=p["pa"]["n"], epilogue="sigmoid_gate", gate=x)
    x1 = conv_taps_nhwc(x, p["c3"]["w"], p["c3"]["b"],
                        taps=_taps_square(3, 1, 1), pad=1, n_out=p["c3"]["n"])
    x2 = conv_taps_nhwc(x, p["c5"]["w"], p["c5"]["b"],
                        taps=_taps_square(5, 1, 2), pad=2, n_out=p["c5"]["n"])
    # bn1/bn2 are per-channel -> one BN+GELU over the concatenated channels.
    x12 = batchnorm_gelu_nhwc(jnp.concatenate([x1, x2], axis=-1),
                              p["bn_w"], p["bn_b"], eps=1e-5)
    # TODO(synk): fuse the 3x3 maxpool into the sizeMatching 1x1 conv prologue.
    x3 = maxpool3x3_nhwc(x)
    x3 = conv2d_mm_nhwc(x3, p["sm"]["w"], p["sm"]["b"], kh=1, kw=1, stride=1,
                        n_out=p["sm"]["n"])
    return (jnp.concatenate([x12, x3], axis=-1) + pa).astype(jnp.bfloat16)


def pixelattention_forward(x, p):
    return conv2d_mm_nhwc(x, p["c1"]["w"], p["c1"]["b"], kh=1, kw=1, stride=1,
                          n_out=p["c1"]["n"], epilogue="sigmoid_gate", gate=x)


def convnext_forward(x_nchw, params):
    x = jnp.transpose(x_nchw, (0, 2, 3, 1)).astype(jnp.float32)   # NCHW -> NHWC
    for i in range(4):
        if i == 0:
            x = conv2d_mm_nhwc(x, params["stem"]["w"], params["stem"]["b"],
                               kh=4, kw=4, stride=4, n_out=params["stem"]["n"])
            N, H, W, C = x.shape
            x = layernorm_2d(x.reshape(-1, C), params["stem_ln_w"],
                             params["stem_ln_b"], eps=1e-6).reshape(N, H, W, C)
        else:
            d = params["down"][i - 1]
            N, H, W, C = x.shape
            x = layernorm_2d(x.reshape(-1, C), d["ln_w"], d["ln_b"],
                             eps=1e-6).reshape(N, H, W, C)
            x = conv2d_mm_nhwc(x, d["conv"]["w"], d["conv"]["b"], kh=2, kw=2,
                               stride=2, n_out=d["conv"]["n"])
        for bp in params["stages"][i]["blocks"]:
            x = block_forward(x, bp)
        extra = params["stages"][i]["extra"]
        if i == 0:
            x = dcblock_forward(x, extra)
        elif i == 1:
            x = customblock_forward(x, extra)
        elif i == 2:
            x = paralleconv_forward(x, extra)
        else:
            x = pixelattention_forward(x, extra)
    xg = jnp.mean(x.astype(jnp.float32), axis=(1, 2))       # global average pool
    xg = layernorm_2d(xg, params["norm_w"], params["norm_b"], eps=1e-6,
                      out_dtype=jnp.float32)
    return matmul_fused(xg, params["head"]["w"], params["head"]["b"],
                        n_out=params["head"]["n"], out_dtype=jnp.float32)


# ---------------------------------------------------------------------------
# Deterministic parameter construction (shapes/semantics match the PyTorch
# module; all matmul-side weights are stored pre-transposed AND pre-padded to
# lane-dense (K, Np)/(1, Np) in bf16/f32 at init -> no per-forward weight pads).
# ---------------------------------------------------------------------------
class _KeyGen:
    def __init__(self, key):
        self._key = key

    def __call__(self):
        self._key, sub = jax.random.split(self._key)
        return sub


def _conv_mm_init(kg, cout, cin, kh, kw):
    w = 0.02 * jax.random.normal(kg(), (cout, cin, kh, kw), jnp.float32)
    n_p = _round_up(cout, 128)
    w2d = jnp.transpose(w, (2, 3, 1, 0)).reshape(kh * kw * cin, cout)
    return {"w": jnp.pad(w2d, ((0, 0), (0, n_p - cout))).astype(jnp.bfloat16),
            "b": jnp.zeros((1, n_p), jnp.float32), "n": cout}


def _conv_tap_init(kg, cout, cin, k):
    w = 0.02 * jax.random.normal(kg(), (cout, cin, k, k), jnp.float32)
    n_p = _round_up(cout, 128)
    wt = jnp.transpose(w, (2, 3, 1, 0)).reshape(k * k, cin, cout)
    return {"w": jnp.pad(wt, ((0, 0), (0, 0), (0, n_p - cout))).astype(jnp.bfloat16),
            "b": jnp.zeros((1, n_p), jnp.float32), "n": cout}


def _dcfold_init(kg, cin=96, cout_each=32, n_branches=3):
    n_tot = n_branches * cout_each
    n_p = _round_up(n_tot, 128)
    wt = jnp.zeros((9 * n_branches, cin, n_p), jnp.float32)
    for bi in range(n_branches):
        w = 0.02 * jax.random.normal(kg(), (cout_each, cin, 3, 3), jnp.float32)
        wb = jnp.transpose(w, (2, 3, 1, 0)).reshape(9, cin, cout_each)
        wt = wt.at[bi * 9:(bi + 1) * 9, :,
                   bi * cout_each:(bi + 1) * cout_each].set(wb)
    return {"w": wt.astype(jnp.bfloat16),
            "b": jnp.zeros((1, n_p), jnp.float32), "n": n_tot}


def _linear_init(kg, cin, cout):
    w = 0.02 * jax.random.normal(kg(), (cout, cin), jnp.float32)
    n_p = _round_up(cout, 128)
    return {"w": jnp.pad(jnp.transpose(w),
                         ((0, 0), (0, n_p - cout))).astype(jnp.bfloat16),
            "b": jnp.zeros((1, n_p), jnp.float32), "n": cout}


def _block_init(kg, dim, layer_scale_init_value=1e-6):
    dw = 0.02 * jax.random.normal(kg(), (dim, 1, 7, 7), jnp.float32)
    n_p = _round_up(dim, 128)
    gamma = jnp.zeros((1, n_p), jnp.float32).at[0, :dim].set(layer_scale_init_value)
    return {"dw_w": jnp.transpose(dw[:, 0, :, :], (1, 2, 0)).reshape(49, dim),
            "dw_b": jnp.zeros((1, dim), jnp.float32),
            "ln_w": jnp.ones((1, dim), jnp.float32),
            "ln_b": jnp.zeros((1, dim), jnp.float32),
            "pw1": _linear_init(kg, dim, 4 * dim),
            "pw2": _linear_init(kg, 4 * dim, dim),
            "gamma": gamma}


def init_convnext_params(key, in_chans=3, num_classes=38, depths=(3, 3, 9, 3),
                         dims=(96, 192, 384, 768), layer_scale_init_value=1e-6):
    kg = _KeyGen(key)
    p = {"stem": _conv_mm_init(kg, dims[0], in_chans, 4, 4),
         "stem_ln_w": jnp.ones((1, dims[0]), jnp.float32),
         "stem_ln_b": jnp.zeros((1, dims[0]), jnp.float32),
         "down": [{"ln_w": jnp.ones((1, dims[i]), jnp.float32),
                   "ln_b": jnp.zeros((1, dims[i]), jnp.float32),
                   "conv": _conv_mm_init(kg, dims[i + 1], dims[i], 2, 2)}
                  for i in range(3)],
         "stages": []}
    for i in range(4):
        blocks = [_block_init(kg, dims[i], layer_scale_init_value)
                  for _ in range(depths[i])]
        if i == 0:
            extra = _dcfold_init(kg, cin=96, cout_each=32)
            extra.update({"bn_w": jnp.ones((1, 96), jnp.float32),
                          "bn_b": jnp.zeros((1, 96), jnp.float32)})
        elif i == 1:
            extra = {"c3": _conv_tap_init(kg, 192, 192, 3),
                     "bn_w": jnp.ones((1, 192), jnp.float32),
                     "bn_b": jnp.zeros((1, 192), jnp.float32),
                     "c1": _conv_mm_init(kg, 192, 192, 1, 1)}
        elif i == 2:
            extra = {"pa": _conv_mm_init(kg, 384, 384, 1, 1),
                     "c3": _conv_tap_init(kg, 128, 384, 3),
                     "c5": _conv_tap_init(kg, 128, 384, 5),
                     "sm": _conv_mm_init(kg, 128, 384, 1, 1),
                     "bn_w": jnp.ones((1, 256), jnp.float32),
                     "bn_b": jnp.zeros((1, 256), jnp.float32)}
        else:
            extra = {"c1": _conv_mm_init(kg, 768, 768, 1, 1)}
        p["stages"].append({"blocks": blocks, "extra": extra})
    p["norm_w"] = jnp.ones((1, dims[-1]), jnp.float32)
    p["norm_b"] = jnp.zeros((1, dims[-1]), jnp.float32)
    p["head"] = _linear_init(kg, dims[-1], num_classes)  # head_init_scale=1
    return p


if __name__ == "__main__":
    key = jax.random.PRNGKey(0)
    k_in, k_par = jax.random.split(key)
    # Smallest spatial size compatible with /4 stem + three /2 downsamples.
    x = jax.random.normal(k_in, (2, 3, 32, 32), jnp.float32)
    params = init_convnext_params(k_par)
    out = convnext_forward(x, params)
    out = jax.block_until_ready(out)
    assert out.shape == (2, 38), out.shape
    assert bool(jnp.all(jnp.isfinite(out)))
    print("KERNEL_OK")
</pallas_src>

<mosaic_0001>
module attributes {stable_mosaic.version = 11 : i64} {
  func.func @_matmul_kernel(%arg0: i32, %arg1: i32, %arg2: i32, %arg3: memref<128x48xbf16, #tpu.memory_space<vmem>>, %arg4: memref<48x128xbf16, #tpu.memory_space<vmem>>, %arg5: memref<1x128xf32, #tpu.memory_space<vmem>>, %arg6: memref<128x128xbf16, #tpu.memory_space<vmem>>, %arg7: memref<128x128xf32, #tpu.memory_space<vmem>>) attributes {dimension_semantics = [#tpu.dimension_semantics<parallel>, #tpu.dimension_semantics<parallel>, #tpu.dimension_semantics<arbitrary>], iteration_bounds = array<i64: 1, 1, 1>, scalar_prefetch = 0 : i64, scratch_operands = 1 : i64, tpu.core_type = #tpu.core_type<tc>, window_params = [{transform_indices = @transform_0, window_bounds = array<i64: 128, 48>}, {transform_indices = @transform_1, window_bounds = array<i64: 48, 128>}, {transform_indices = @transform_2, window_bounds = array<i64: 1, 128>}, {transform_indices = @transform_3, window_bounds = array<i64: 128, 128>}]} {
    %c0_i32 = arith.constant 0 : i32
    %0 = arith.cmpi eq, %arg2, %c0_i32 : i32
    %1 = arith.extui %0 : i1 to i32
    %c0_i32_0 = arith.constant 0 : i32
    %2 = arith.cmpi ne, %1, %c0_i32_0 : i32
    scf.if %2 {
      %cst_10 = arith.constant 0.000000e+00 : f32
      %12 = vector.broadcast %cst_10 : f32 to vector<128x128xf32>
      %c0_11 = arith.constant 0 : index
      %c0_12 = arith.constant 0 : index
      %13 = vector.load %arg7[%c0_11, %c0_12] : memref<128x128xf32, #tpu.memory_space<vmem>>, vector<128x128xf32>
      tpu.vector_store %arg7[%c0_11, %c0_12], %12 {strides = array<i32>} : memref<128x128xf32, #tpu.memory_space<vmem>>, vector<128x128xf32>,
    } else {
    }
    %c0 = arith.constant 0 : index
    %c0_1 = arith.constant 0 : index
    %3 = vector.load %arg7[%c0, %c0_1] : memref<128x128xf32, #tpu.memory_space<vmem>>, vector<128x128xf32>
    %c0_2 = arith.constant 0 : index
    %c0_3 = arith.constant 0 : index
    %4 = vector.load %arg3[%c0_2, %c0_3] : memref<128x48xbf16, #tpu.memory_space<vmem>>, vector<128x48xbf16>
    %c0_4 = arith.constant 0 : index
    %c0_5 = arith.constant 0 : index
    %5 = vector.load %arg4[%c0_4, %c0_5] : memref<48x128xbf16, #tpu.memory_space<vmem>>, vector<48x128xbf16>
    %cst = arith.constant dense<0.000000e+00> : vector<128x128xf32>
    %6 = tpu.matmul %4, %5, %cst {dimension_numbers = #tpu.dot_dimension_numbers<[1], [0], [0], [1], [0, 0, 1, 1], [], []>} : vector<128x48xbf16>, vector<48x128xbf16>, vector<128x128xf32> -> vector<128x128xf32>
    %7 = arith.addf %3, %6 : vector<128x128xf32>
    %c0_6 = arith.constant 0 : index
    %c0_7 = arith.constant 0 : index
    %8 = vector.load %arg7[%c0_6, %c0_7] : memref<128x128xf32, #tpu.memory_space<vmem>>, vector<128x128xf32>
    tpu.vector_store %arg7[%c0_6, %c0_7], %7 {strides = array<i32>} : memref<128x128xf32, #tpu.memory_space<vmem>>, vector<128x128xf32>,
    %c0_i32_8 = arith.constant 0 : i32
    %9 = arith.cmpi eq, %arg2, %c0_i32_8 : i32
    %10 = arith.extui %9 : i1 to i32
    %c0_i32_9 = arith.constant 0 : i32
    %11 = arith.cmpi ne, %10, %c0_i32_9 : i32
    scf.if %11 {
      %c0_10 = arith.constant 0 : index
      %c0_11 = arith.constant 0 : index
      %12 = vector.load %arg7[%c0_10, %c0_11] : memref<128x128xf32, #tpu.memory_space<vmem>>, vector<128x128xf32>
      %c0_12 = arith.constant 0 : index
      %c0_13 = arith.constant 0 : index
      %13 = vector.load %arg5[%c0_12, %c0_13] : memref<1x128xf32, #tpu.memory_space<vmem>>, vector<1x128xf32>
      %14 = vector.broadcast %13 : vector<1x128xf32> to vector<128x128xf32>
      %15 = arith.addf %12, %14 : vector<128x128xf32>
      %16 = arith.truncf %15 : vector<128x128xf32> to vector<128x128xbf16>
      %c0_14 = arith.constant 0 : index
      %c0_15 = arith.constant 0 : index
      %17 = vector.load %arg6[%c0_14, %c0_15] : memref<128x128xbf16, #tpu.memory_space<vmem>>, vector<128x128xbf16>
      tpu.vector_store %arg6[%c0_14, %c0_15], %16 {strides = array<i32>} : memref<128x128xbf16, #tpu.memory_space<vmem>>, vector<128x128xbf16>,
    } else {
    }
    return
  }
  func.func @transform_0(%arg0: i32, %arg1: i32, %arg2: i32) -> (i32, i32) {
    %c0_i32 = arith.constant 0 : i32
    return %arg0, %arg2 : i32, i32
  }
  func.func @transform_1(%arg0: i32, %arg1: i32, %arg2: i32) -> (i32, i32) {
    %c0_i32 = arith.constant 0 : i32
    return %arg2, %arg1 : i32, i32
  }
  func.func @transform_2(%arg0: i32, %arg1: i32, %arg2: i32) -> (i32, i32) {
    %c0_i32 = arith.constant 0 : i32
    %c0_i32_0 = arith.constant 0 : i32
    return %c0_i32, %arg1 : i32, i32
  }
  func.func @transform_3(%arg0: i32, %arg1: i32, %arg2: i32) -> (i32, i32) {
    %c0_i32 = arith.constant 0 : i32
    return %arg0, %arg1 : i32, i32
  }
}

</mosaic_0001>

<llo_original>
// kernel: matmul_fused.1
$region0: #{matmul_fused.1}
  #allocation0 [shape = 'u32[]', space=smem, size = 0x4, offset = 0x4, fixed_abs, tag = 'smem constant byte address 0x4 - core index']
  #allocation1 [shape = 'u32[144,128]{1,0:T(1,128)}', space=vmem, size = 0x12000, scoped, tag = 'internal scratch']
  #allocation2 [shape = 'f32[128,128]{1,0:T(8,128)}', space=vmem, size = 0x10000, scoped, tag = 'scratch operand']
  %s0 = inlined_call_operand.hbm [shape: bf16[128,48], index: 0, kind: input, shape index: {}]
  %s1 = inlined_call_operand.hbm [shape: bf16[48,128], index: 1, kind: input, shape index: {}]
  %s2 = inlined_call_operand.hbm [shape: f32[1,128], index: 2, kind: input, shape index: {}]
  %s3 = inlined_call_operand.hbm [shape: bf16[128,128], index: 3, kind: output, shape index: {}]
  %s4 = sld [smem:[#allocation0]]
  $region42: #{matmul_fused.1} parent=0
    _
  %s6 = ssub.s32 1, %s4
  %s7 = scalar_select 0, %s6, %s4
  $region1: #{matmul_fused.1} parent=0
    #allocation3 [shape = 'u8[32768]{0}', space=vmem, size = 0x8000, scoped, tag = 'input window, operand 0, single buffered']
    #allocation4 [shape = 's32[1]{0}', space=sflag, size = 0x4, scoped, tag = 'scoped memory for matmul_fused.1']
    #allocation5 [shape = 's32[1]{0}', space=sflag, size = 0x4, scoped, tag = 'scoped memory for matmul_fused.1']
    #allocation6 [shape = 'u8[12288]{0}', space=vmem, size = 0x3000, scoped, tag = 'input window, operand 1, single buffered']
    #allocation7 [shape = 's32[1]{0}', space=sflag, size = 0x4, scoped, tag = 'scoped memory for matmul_fused.1']
    #allocation8 [shape = 'u8[512]{0}', space=vmem, size = 0x400, scoped, tag = 'input window, operand 2, single buffered']
    #allocation9 [shape = 'u8[32768]{0}', space=vmem, size = 0x8000, scoped, tag = 'output window, operand 0, single buffered']
    %8 = vsyncpa [#allocation4], 0
    %9 = vsyncpa [#allocation7], 0
    %10 = vsyncpa [#allocation5], 0
    // Predicated region
    $region2: #{matmul_fused.1} parent=1 // pred_check
      _
    $region3: #{matmul_fused.1} parent=1 // pred_check_branch
      %12 = sbr.rel (0) target = $region5
    $region4: #{matmul_fused.1} parent=1 // pred_region
      %s14 = ssub.s32 1024, 1024
      %15 = vsyncadd [#allocation4], %s14
      %s16 = sshll.u32 [#allocation3], 4
      %s17 = int_to_ptr.vmem [resolvable:$true] %s16
      %22 = dma.hbm_to_vmem [thread:$0]  %s0, 1024, %s17, [#allocation4], 64, 64, 4
    $region5: #{matmul_fused.1} parent=1 // pred_fallthru
      _
    // Predicated region
    $region6: #{matmul_fused.1} parent=1 // pred_check
      _
    $region7: #{matmul_fused.1} parent=1 // pred_check_branch
      %24 = sbr.rel (0) target = $region9
    $region8: #{matmul_fused.1} parent=1 // pred_region
      %s26 = ssub.s32 384, 384
      %27 = vsyncadd [#allocation7], %s26
      %s28 = sshll.u32 [#allocation6], 4
      %s29 = int_to_ptr.vmem [resolvable:$true] %s28
      %34 = dma.hbm_to_vmem [thread:$0]  %s1, 384, %s29, [#allocation7], 64, 64, 4
    $region9: #{matmul_fused.1} parent=1 // pred_fallthru
      _
    // Predicated region
    $region10: #{matmul_fused.1} parent=1 // pred_check
      _
    $region11: #{matmul_fused.1} parent=1 // pred_check_branch
      %36 = sbr.rel (0) target = $region13
    $region12: #{matmul_fused.1} parent=1 // pred_region
      %s38 = ssub.s32 16, 16
      %39 = vsyncadd [#allocation7], %s38
      %s41 = sshll.u32 [#allocation8], 4
      %s42 = int_to_ptr.vmem [resolvable:$true] %s41
      %44 = dma.hbm_to_vmem [thread:$0]  %s2, 16, %s42, [#allocation7]
    $region13: #{matmul_fused.1} parent=1 // pred_fallthru
      _
    // Predicated region
    $region14: #{matmul_fused.1} parent=1 // pred_check
      _
    $region15: #{matmul_fused.1} parent=1 // pred_check_branch
      %46 = sbr.rel (0) target = $region17
    $region16: #{matmul_fused.1} parent=1 // pred_region
      %47 = dma.done [#allocation4], 1024
    $region17: #{matmul_fused.1} parent=1 // pred_fallthru
      _
    // Predicated region
    $region18: #{matmul_fused.1} parent=1 // pred_check
      _
    $region19: #{matmul_fused.1} parent=1 // pred_check_branch
      %49 = sbr.rel (0) target = $region21
    $region20: #{matmul_fused.1} parent=1 // pred_region
      %50 = dma.done [#allocation7], 384
    $region21: #{matmul_fused.1} parent=1 // pred_fallthru
      _
    // Predicated region
    $region22: #{matmul_fused.1} parent=1 // pred_check
      _
    $region23: #{matmul_fused.1} parent=1 // pred_check_branch
      %52 = sbr.rel (0) target = $region25
    $region24: #{matmul_fused.1} parent=1 // pred_region
      %53 = dma.done [#allocation7], 16
    $region25: #{matmul_fused.1} parent=1 // pred_fallthru
      _
    %p55 = scmp.eq.s32.totalorder 0, 0
    // Predicated region
    $region26: #{matmul_fused.1} parent=1 // pred_check
      %p56 = pneg %p55
    $region27: #{matmul_fused.1} parent=1 // pred_check_branch
      %58 = sbr.rel (%p56) target = $region29
    $region28: #{matmul_fused.1} parent=1 // pred_region
      %59 = vst [vmem:[#allocation2] sm:$0xff] 0.0
      %60 = vst [vmem:[#allocation2 + $0x8] sm:$0xff] 0.0
      %61 = vst [vmem:[#allocation2 + $0x10] sm:$0xff] 0.0
      %62 = vst [vmem:[#allocation2 + $0x18] sm:$0xff] 0.0
      %63 = vst [vmem:[#allocation2 + $0x20] sm:$0xff] 0.0
      %64 = vst [vmem:[#allocation2 + $0x28] sm:$0xff] 0.0
      %65 = vst [vmem:[#allocation2 + $0x30] sm:$0xff] 0.0
      %66 = vst [vmem:[#allocation2 + $0x38] sm:$0xff] 0.0
      %67 = vst [vmem:[#allocation2 + $0x40] sm:$0xff] 0.0
      %68 = vst [vmem:[#allocation2 + $0x48] sm:$0xff] 0.0
      %69 = vst [vmem:[#allocation2 + $0x50] sm:$0xff] 0.0
      %70 = vst [vmem:[#allocation2 + $0x58] sm:$0xff] 0.0
      %71 = vst [vmem:[#allocation2 + $0x60] sm:$0xff] 0.0
      %72 = vst [vmem:[#allocation2 + $0x68] sm:$0xff] 0.0
      %73 = vst [vmem:[#allocation2 + $0x70] sm:$0xff] 0.0
      %74 = vst [vmem:[#allocation2 + $0x78] sm:$0xff] 0.0
    $region29: #{matmul_fused.1} parent=1 // pred_fallthru
      _
    %v75 = vld [vmem:[#allocation2] sm:$0xff]
    %v76 = vld [vmem:[#allocation2 + $0x8] sm:$0xff]
    %v77 = vld [vmem:[#allocation2 + $0x10] sm:$0xff]
    %v78 = vld [vmem:[#allocation2 + $0x18] sm:$0xff]
    %v79 = vld [vmem:[#allocation2 + $0x20] sm:$0xff]
    %v80 = vld [vmem:[#allocation2 + $0x28] sm:$0xff]
    %v81 = vld [vmem:[#allocation2 + $0x30] sm:$0xff]
    %v82 = vld [vmem:[#allocation2 + $0x38] sm:$0xff]
    %v83 = vld [vmem:[#allocation2 + $0x40] sm:$0xff]
    %v84 = vld [vmem:[#allocation2 + $0x48] sm:$0xff]
    %v85 = vld [vmem:[#allocation2 + $0x50] sm:$0xff]
    %v86 = vld [vmem:[#allocation2 + $0x58] sm:$0xff]
    %v87 = vld [vmem:[#allocation2 + $0x60] sm:$0xff]
    %v88 = vld [vmem:[#allocation2 + $0x68] sm:$0xff]
    %v89 = vld [vmem:[#allocation2 + $0x70] sm:$0xff]
    %v90 = vld [vmem:[#allocation2 + $0x78] sm:$0xff]
    %v91 = vld [vmem:[#allocation3] sm:$0xf]
    %v92 = vld [vmem:[#allocation3 + $0x4] sm:$0xf]
    %v93 = vld [vmem:[#allocation3 + $0x8] sm:$0xf]
    %v94 = vld [vmem:[#allocation3 + $0xc] sm:$0xf]
    %v95 = vld [vmem:[#allocation3 + $0x10] sm:$0xf]
    %v96 = vld [vmem:[#allocation3 + $0x14] sm:$0xf]
    %v97 = vld [vmem:[#allocation3 + $0x18] sm:$0xf]
    %v98 = vld [vmem:[#allocation3 + $0x1c] sm:$0xf]
    %v99 = vld [vmem:[#allocation3 + $0x20] sm:$0xf]
    %v100 = vld [vmem:[#allocation3 + $0x24] sm:$0xf]
    %v101 = vld [vmem:[#allocation3 + $0x28] sm:$0xf]
    %v102 = vld [vmem:[#allocation3 + $0x2c] sm:$0xf]
    %v103 = vld [vmem:[#allocation3 + $0x30] sm:$0xf]
    %v104 = vld [vmem:[#allocation3 + $0x34] sm:$0xf]
    %v105 = vld [vmem:[#allocation3 + $0x38] sm:$0xf]
    %v106 = vld [vmem:[#allocation3 + $0x3c] sm:$0xf]
    %v107 = vld [vmem:[#allocation6] sm:$0xf]
    %v108 = vld [vmem:[#allocation6 + $0x4] sm:$0xf]
    %v109 = vld [vmem:[#allocation6 + $0x8] sm:$0xf]
    %v110 = vld [vmem:[#allocation6 + $0xc] sm:$0xf]
    %v111 = vld [vmem:[#allocation6 + $0x10] sm:$0xf]
    %v112 = vld [vmem:[#allocation6 + $0x14] sm:$0xf]
    %v129 = vunpack.c.l.b16 %v91
    %v130 = vunpack.c.l.b16 %v92
    %v131 = vunpack.c.l.b16 %v93
    %v132 = vunpack.c.l.b16 %v94
    %v133 = vunpack.c.l.b16 %v95
    %v134 = vunpack.c.l.b16 %v96
    %v135 = vunpack.c.l.b16 %v97
    %v136 = vunpack.c.l.b16 %v98
    %v137 = vunpack.c.l.b16 %v99
    %v138 = vunpack.c.l.b16 %v100
    %v139 = vunpack.c.l.b16 %v101
    %v140 = vunpack.c.l.b16 %v102
    %v141 = vunpack.c.l.b16 %v103
    %v142 = vunpack.c.l.b16 %v104
    %v143 = vunpack.c.l.b16 %v105
    %v144 = vunpack.c.l.b16 %v106
    %v145 = vpack.c.b16 %v130, %v129
    %v146 = vpack.c.b16 %v132, %v131
    %v147 = vpack.c.b16 %v134, %v133
    %v148 = vpack.c.b16 %v136, %v135
    %v149 = vpack.c.b16 %v138, %v137
    %v150 = vpack.c.b16 %v140, %v139
    %v151 = vpack.c.b16 %v142, %v141
    %v152 = vpack.c.b16 %v144, %v143
    %v159 = vunpack.c.l.b16 %v107
    %v160 = vunpack.c.l.b16 %v108
    %v161 = vunpack.c.l.b16 %v109
    %v162 = vunpack.c.l.b16 %v110
    %v163 = vunpack.c.l.b16 %v111
    %v164 = vunpack.c.l.b16 %v112
    %v165 = vpack.c.b16 %v160, %v159
    %v166 = vpack.c.b16 %v162, %v161
    %v167 = vpack.c.b16 %v164, %v163
    %vm171 = vcmask 392192
    %v173 = vsel %vm171, %v145, 0
    %v176 = vsel %vm171, %v146, 0
    %v179 = vsel %vm171, %v147, 0
    %v182 = vsel %vm171, %v148, 0
    %v185 = vsel %vm171, %v149, 0
    %v188 = vsel %vm171, %v150, 0
    %v191 = vsel %vm171, %v151, 0
    %v194 = vsel %vm171, %v152, 0
    %196 = vmatprep.subr.bf16.mxu0 0
    %197 = vmatpush1.bf16.msra.mxu0 %v165
    %198 = vmatprep.subr.bf16.mxu0 0
    %199 = vmatpush1.bf16.msra.mxu0 %v166
    %200 = vmatprep.subr.bf16.mxu0 0
    %201 = vmatpush1.bf16.msra.mxu0 %v167
    %202 = vmatprep.subr.bf16.mxu0 0
    %203 = vmatpush1.bf16.msra.mxu0 0
    %204 = vmatprep.subr.bf16.mxu0 0
    %205 = vmatpush1.bf16.msra.mxu0 0
    %206 = vmatprep.subr.bf16.mxu0 0
    %207 = vmatpush1.bf16.msra.mxu0 0
    %208 = vmatprep.subr.bf16.mxu0 0
    %209 = vmatpush1.bf16.msra.mxu0 0
    %210 = vmatprep.subr.bf16.mxu0 0
    %211 = vmatpush1.bf16.msra.mxu0 0
    %212 = vmatprep.subr.bf16.mxu0 0
    %213 = vmatpush1.bf16.msra.mxu0 0
    %214 = vmatprep.subr.bf16.mxu0 0
    %215 = vmatpush1.bf16.msra.mxu0 0
    %216 = vmatprep.subr.bf16.mxu0 0
    %217 = vmatpush1.bf16.msra.mxu0 0
    %218 = vmatprep.subr.bf16.mxu0 0
    %219 = vmatpush1.bf16.msra.mxu0 0
    %220 = vmatprep.subr.bf16.mxu0 0
    %221 = vmatpush1.bf16.msra.mxu0 0
    %222 = vmatprep.subr.bf16.mxu0 0
    %223 = vmatpush1.bf16.msra.mxu0 0
    %224 = vmatprep.subr.bf16.mxu0 0
    %225 = vmatpush1.bf16.msra.mxu0 0
    %226 = vmatprep.subr.bf16.mxu0 0
    %227 = vmatpush1.bf16.msra.mxu0 0
    %228 = vmatprep.mubr.bf16.mxu0 0
    %229 = vmatmul.mubr.bf16.gmra.mrb[0].mxu0 %v173
    %v230 = vpop.f32.mrb[0].mxu0
    %v231 = vadd.f32 0.0, %v230
    %v232 = vpop.f32.mrb[0].mxu0
    %v233 = vpop.f32.mrb[0].mxu0
    %v234 = vadd.f32 0.0, %v233
    %v235 = vpop.f32.mrb[0].mxu0
    %236 = vmatprep.mubr.bf16.mxu0 0
    %237 = vmatmul.mubr.bf16.gmra.mrb[0].mxu0 %v176
    %v238 = vpop.f32.mrb[0].mxu0
    %v239 = vadd.f32 0.0, %v238
    %v240 = vpop.f32.mrb[0].mxu0
    %v241 = vpop.f32.mrb[0].mxu0
    %v242 = vadd.f32 0.0, %v241
    %v243 = vpop.f32.mrb[0].mxu0
    %244 = vmatprep.mubr.bf16.mxu0 0
    %245 = vmatmul.mubr.bf16.gmra.mrb[0].mxu0 %v179
    %v246 = vpop.f32.mrb[0].mxu0
    %v247 = vadd.f32 0.0, %v246
    %v248 = vpop.f32.mrb[0].mxu0
    %v249 = vpop.f32.mrb[0].mxu0
    %v250 = vadd.f32 0.0, %v249
    %v251 = vpop.f32.mrb[0].mxu0
    %252 = vmatprep.mubr.bf16.mxu0 0
    %253 = vmatmul.mubr.bf16.gmra.mrb[0].mxu0 %v182
    %v254 = vpop.f32.mrb[0].mxu0
    %v255 = vadd.f32 0.0, %v254
    %v256 = vpop.f32.mrb[0].mxu0
    %v257 = vpop.f32.mrb[0].mxu0
    %v258 = vadd.f32 0.0, %v257
    %v259 = vpop.f32.mrb[0].mxu0
    %260 = vmatprep.mubr.bf16.mxu0 0
    %261 = vmatmul.mubr.bf16.gmra.mrb[0].mxu0 %v185
    %v262 = vpop.f32.mrb[0].mxu0
    %v263 = vadd.f32 0.0, %v262
    %v264 = vpop.f32.mrb[0].mxu0
    %v265 = vpop.f32.mrb[0].mxu0
    %v266 = vadd.f32 0.0, %v265
    %v267 = vpop.f32.mrb[0].mxu0
    %268 = vmatprep.mubr.bf16.mxu0 0
    %269 = vmatmul.mubr.bf16.gmra.mrb[0].mxu0 %v188
    %v270 = vpop.f32.mrb[0].mxu0
    %v271 = vadd.f32 0.0, %v270
    %v272 = vpop.f32.mrb[0].mxu0
    %v273 = vpop.f32.mrb[0].mxu0
    %v274 = vadd.f32 0.0, %v273
    %v275 = vpop.f32.mrb[0].mxu0
    %276 = vmatprep.mubr.bf16.mxu0 0
    %277 = vmatmul.mubr.bf16.gmra.mrb[0].mxu0 %v191
    %v278 = vpop.f32.mrb[0].mxu0
    %v279 = vadd.f32 0.0, %v278
    %v280 = vpop.f32.mrb[0].mxu0
    %v281 = vpop.f32.mrb[0].mxu0
    %v282 = vadd.f32 0.0, %v281
    %v283 = vpop.f32.mrb[0].mxu0
    %284 = vmatprep.mubr.bf16.mxu0 0
    %285 = vmatmul.mubr.bf16.gmra.mrb[0].mxu0 %v194
    %v286 = vpop.f32.mrb[0].mxu0
    %v287 = vadd.f32 0.0, %v286
    %v288 = vpop.f32.mrb[0].mxu0
    %v289 = vpop.f32.mrb[0].mxu0
    %v290 = vadd.f32 0.0, %v289
    %v291 = vpop.f32.mrb[0].mxu0
    %292 = vdwg.mxu0
    %v293 = vadd.f32 %v75, %v231
    %v294 = vadd.f32 %v76, %v234
    %v295 = vadd.f32 %v77, %v239
    %v296 = vadd.f32 %v78, %v242
    %v297 = vadd.f32 %v79, %v247
    %v298 = vadd.f32 %v80, %v250
    %v299 = vadd.f32 %v81, %v255
    %v300 = vadd.f32 %v82, %v258
    %v301 = vadd.f32 %v83, %v263
    %v302 = vadd.f32 %v84, %v266
    %v303 = vadd.f32 %v85, %v271
    %v304 = vadd.f32 %v86, %v274
    %v305 = vadd.f32 %v87, %v279
    %v306 = vadd.f32 %v88, %v282
    %v307 = vadd.f32 %v89, %v287
    %v308 = vadd.f32 %v90, %v290
    %309 = vst [vmem:[#allocation2] sm:$0xff] %v293
    %310 = vst [vmem:[#allocation2 + $0x8] sm:$0xff] %v294
    %311 = vst [vmem:[#allocation2 + $0x10] sm:$0xff] %v295
    %312 = vst [vmem:[#allocation2 + $0x18] sm:$0xff] %v296
    %313 = vst [vmem:[#allocation2 + $0x20] sm:$0xff] %v297
    %314 = vst [vmem:[#allocation2 + $0x28] sm:$0xff] %v298
    %315 = vst [vmem:[#allocation2 + $0x30] sm:$0xff] %v299
    %316 = vst [vmem:[#allocation2 + $0x38] sm:$0xff] %v300
    %317 = vst [vmem:[#allocation2 + $0x40] sm:$0xff] %v301
    %318 = vst [vmem:[#allocation2 + $0x48] sm:$0xff] %v302
    %319 = vst [vmem:[#allocation2 + $0x50] sm:$0xff] %v303
    %320 = vst [vmem:[#allocation2 + $0x58] sm:$0xff] %v304
    %321 = vst [vmem:[#allocation2 + $0x60] sm:$0xff] %v305
    %322 = vst [vmem:[#allocation2 + $0x68] sm:$0xff] %v306
    %323 = vst [vmem:[#allocation2 + $0x70] sm:$0xff] %v307
    %324 = vst [vmem:[#allocation2 + $0x78] sm:$0xff] %v308
    // Predicated region
    $region30: #{matmul_fused.1} parent=1 // pred_check
      %p325 = pneg %p55
    $region31: #{matmul_fused.1} parent=1 // pred_check_branch
      %327 = sbr.rel (%p325) target = $region33
    $region32: #{matmul_fused.1} parent=1 // pred_region
      %v328 = vld [vmem:[#allocation2] sm:$0xff]
      %v329 = vld [vmem:[#allocation2 + $0x8] sm:$0xff]
      %v330 = vld [vmem:[#allocation2 + $0x10] sm:$0xff]
      %v331 = vld [vmem:[#allocation2 + $0x18] sm:$0xff]
      %v332 = vld [vmem:[#allocation2 + $0x20] sm:$0xff]
      %v333 = vld [vmem:[#allocation2 + $0x28] sm:$0xff]
      %v334 = vld [vmem:[#allocation2 + $0x30] sm:$0xff]
      %v335 = vld [vmem:[#allocation2 + $0x38] sm:$0xff]
      %v336 = vld [vmem:[#allocation2 + $0x40] sm:$0xff]
      %v337 = vld [vmem:[#allocation2 + $0x48] sm:$0xff]
      %v338 = vld [vmem:[#allocation2 + $0x50] sm:$0xff]
      %v339 = vld [vmem:[#allocation2 + $0x58] sm:$0xff]
      %v340 = vld [vmem:[#allocation2 + $0x60] sm:$0xff]
      %v341 = vld [vmem:[#allocation2 + $0x68] sm:$0xff]
      %v342 = vld [vmem:[#allocation2 + $0x70] sm:$0xff]
      %v343 = vld [vmem:[#allocation2 + $0x78] sm:$0xff]
      %v344 = vld [vmem:[#allocation8] sm:$0x1]
      %v346 = vlaneseq
      %v347 = vshrl.u32 %v346, 7
      %v348 = vsub.s32 0, %v347
      %v349 = vrot.slane %v344, %v348
      %v351 = vadd.f32 %v328, %v349
      %v352 = vadd.f32 %v329, %v349
      %v353 = vadd.f32 %v330, %v349
      %v354 = vadd.f32 %v331, %v349
      %v355 = vadd.f32 %v332, %v349
      %v356 = vadd.f32 %v333, %v349
      %v357 = vadd.f32 %v334, %v349
      %v358 = vadd.f32 %v335, %v349
      %v359 = vadd.f32 %v336, %v349
      %v360 = vadd.f32 %v337, %v349
      %v361 = vadd.f32 %v338, %v349
      %v362 = vadd.f32 %v339, %v349
      %v363 = vadd.f32 %v340, %v349
      %v364 = vadd.f32 %v341, %v349
      %v365 = vadd.f32 %v342, %v349
      %v366 = vadd.f32 %v343, %v349
      %v367 = vpack.c.bf16 %v352, %v351
      %v368 = vpack.c.bf16 %v354, %v353
      %v369 = vpack.c.bf16 %v356, %v355
      %v370 = vpack.c.bf16 %v358, %v357
      %v371 = vpack.c.bf16 %v360, %v359
      %v372 = vpack.c.bf16 %v362, %v361
      %v373 = vpack.c.bf16 %v364, %v363
      %v374 = vpack.c.bf16 %v366, %v365
      %v383 = vunpack.c.l.b16 %v367
      %v384 = vunpack.c.h.b16 %v367
      %v385 = vunpack.c.l.b16 %v368
      %v386 = vunpack.c.h.b16 %v368
      %v387 = vunpack.c.l.b16 %v369
      %v388 = vunpack.c.h.b16 %v369
      %v389 = vunpack.c.l.b16 %v370
      %v390 = vunpack.c.h.b16 %v370
      %v391 = vunpack.c.l.b16 %v371
      %v392 = vunpack.c.h.b16 %v371
      %v393 = vunpack.c.l.b16 %v372
      %v394 = vunpack.c.h.b16 %v372
      %v395 = vunpack.c.l.b16 %v373
      %v396 = vunpack.c.h.b16 %v373
      %v397 = vunpack.c.l.b16 %v374
      %v398 = vunpack.c.h.b16 %v374
      %v399 = vpack.c.b16 %v383, %v383
      %v400 = vpack.c.b16 %v384, %v384
      %v401 = vpack.c.b16 %v385, %v385
      %v402 = vpack.c.b16 %v386, %v386
      %v403 = vpack.c.b16 %v387, %v387
      %v404 = vpack.c.b16 %v388, %v388
      %v405 = vpack.c.b16 %v389, %v389
      %v406 = vpack.c.b16 %v390, %v390
      %v407 = vpack.c.b16 %v391, %v391
      %v408 = vpack.c.b16 %v392, %v392
      %v409 = vpack.c.b16 %v393, %v393
      %v410 = vpack.c.b16 %v394, %v394
      %v411 = vpack.c.b16 %v395, %v395
      %v412 = vpack.c.b16 %v396, %v396
      %v413 = vpack.c.b16 %v397, %v397
      %v414 = vpack.c.b16 %v398, %v398
      %431 = vst [vmem:[#allocation9] sm:$0xf] %v399
      %432 = vst [vmem:[#allocation9 + $0x4] sm:$0xf] %v400
      %433 = vst [vmem:[#allocation9 + $0x8] sm:$0xf] %v401
      %434 = vst [vmem:[#allocation9 + $0xc] sm:$0xf] %v402
      %435 = vst [vmem:[#allocation9 + $0x10] sm:$0xf] %v403
      %436 = vst [vmem:[#allocation9 + $0x14] sm:$0xf] %v404
      %437 = vst [vmem:[#allocation9 + $0x18] sm:$0xf] %v405
      %438 = vst [vmem:[#allocation9 + $0x1c] sm:$0xf] %v406
      %439 = vst [vmem:[#allocation9 + $0x20] sm:$0xf] %v407
      %440 = vst [vmem:[#allocation9 + $0x24] sm:$0xf] %v408
      %441 = vst [vmem:[#allocation9 + $0x28] sm:$0xf] %v409
      %442 = vst [vmem:[#allocation9 + $0x2c] sm:$0xf] %v410
      %443 = vst [vmem:[#allocation9 + $0x30] sm:$0xf] %v411
      %444 = vst [vmem:[#allocation9 + $0x34] sm:$0xf] %v412
      %445 = vst [vmem:[#allocation9 + $0x38] sm:$0xf] %v413
      %446 = vst [vmem:[#allocation9 + $0x3c] sm:$0xf] %v414
    $region33: #{matmul_fused.1} parent=1 // pred_fallthru
      _
    // Predicated region
    $region34: #{matmul_fused.1} parent=1 // pred_check
      _
    $region35: #{matmul_fused.1} parent=1 // pred_check_branch
      %448 = sbr.rel (0) target = $region37
    $region36: #{matmul_fused.1} parent=1 // pred_region
      %s450 = ssub.s32 1024, 1024
      %451 = vsyncadd [#allocation5], %s450
      %s452 = sshll.u32 [#allocation9], 4
      %s453 = int_to_ptr.vmem [resolvable:$true] %s452
      %458 = dma.vmem_to_hbm [thread:$0]  %s453, 1024, %s3, [#allocation5], 64, 64, 4
    $region37: #{matmul_fused.1} parent=1 // pred_fallthru
      _
    // Predicated region
    $region38: #{matmul_fused.1} parent=1 // pred_check
      _
    $region39: #{matmul_fused.1} parent=1 // pred_check_branch
      %460 = sbr.rel (0) target = $region41
    $region40: #{matmul_fused.1} parent=1 // pred_region
      %461 = dma.done [#allocation5], 1024
    $region41: #{matmul_fused.1} parent=1 // pred_fallthru
      _
    %462 = vsyncpa [#allocation4], 1
    %463 = vsyncpa [#allocation7], 1
    %464 = vsyncpa [#allocation5], 1

</llo_original>
